<compile_context>
chip_gen: v5e
topology: v5e:2x2
jax: 0.10.0
libtpu: 0.0.40
codegen_flags: <defaults>
</compile_context>

<pallas_src>
import jax
import jax.numpy as jnp
from jax.experimental import pallas as pl
from jax.experimental.pallas import tpu as pltpu

D_IN = 310
H1 = 256
H2 = 128
D_OUT = 64
NEG_SLOPE = 0.01

MIN_TILE = 512            # rows; HBM roofline already ~85% at 512 (measured)
MAX_TILE = 2048           # keeps per-step VMEM ~10-12 MiB (v7x 32 MiB safe)
TARGET_GRID_STEPS = 8     # >=4 steps per TensorCore on v7x, hides edge DMAs


def _leaky_relu(x):
    return jnp.where(x > 0, x, NEG_SLOPE * x)


def _round_up(v, m):
    return ((v + m - 1) // m) * m


def cfe_kernel(x_ref, w1_ref, b1_ref, w2_ref, b2_ref, w3_ref, b3_ref, o_ref):
    """Fused 3-layer MLP on one batch tile.

    Matmuls run at the weights' dtype (bf16 by default -> full-rate MXU) with
    f32 accumulation; bias add + LeakyReLU stay in f32. Intermediates never
    touch HBM.
    """
    cdt = w1_ref.dtype  # compute dtype for MXU operands (bf16 or f32)

    # Layer 1: (T, 310) @ (310, 256) + (1, 256)
    h = jnp.dot(x_ref[...].astype(cdt), w1_ref[...],
                preferred_element_type=jnp.float32)
    h = _leaky_relu(h + b1_ref[...])

    # Layer 2: (T, 256) @ (256, 128) + (1, 128)
    h = jnp.dot(h.astype(cdt), w2_ref[...], preferred_element_type=jnp.float32)
    h = _leaky_relu(h + b2_ref[...])

    # Layer 3: (T, 128) @ (128, 64) + (1, 64)
    h = jnp.dot(h.astype(cdt), w3_ref[...], preferred_element_type=jnp.float32)
    # NOTE(perf): last dim 64 < 128 -> masked store. Review marked the
    # 2-rows-per-vreg packing as measure-first; skipped (output ~17% of bytes).
    o_ref[...] = _leaky_relu(h + b3_ref[...]).astype(o_ref.dtype)


def _pick_tile(n):
    """Adaptive batch tile: >= TARGET_GRID_STEPS grid steps, clamped [512, 2048],
    multiple of 8. Small batches use a single full-extent block (no (8,128)
    constraint when block dim == full array dim)."""
    if n <= MIN_TILE:
        return n
    t = _round_up(pl.cdiv(n, TARGET_GRID_STEPS), 8)
    return max(MIN_TILE, min(MAX_TILE, t))


def _dim_semantics_candidates():
    """CORE_PARALLEL on the batch axis only for v7x-like (2-TC) chips, with a
    fallback to 'parallel'; single-TC v5e/v6e use the known-good 'parallel'."""
    try:
        kind = jax.devices()[0].device_kind.lower()
    except Exception:
        kind = ""
    if ("v7" in kind) or ("7x" in kind):
        return ((pltpu.CORE_PARALLEL,), ("parallel",))
    return (("parallel",),)


def cfe_forward(x, w1, b1, w2, b2, w3, b3, *, use_bf16=True):
    """x: (N, 310). Weights: (F_in, F_out). Biases: (1, F_out). Output: (N, 64) f32."""
    n = x.shape[0]
    tile_n = _pick_tile(n)
    grid = (pl.cdiv(n, tile_n),)

    # bf16 operands for the MXU (f32 accumulation happens in-kernel). In
    # production the caller should store the weights (and ideally x) in bf16 in
    # HBM so these casts disappear and input traffic halves.
    cdt = jnp.bfloat16 if use_bf16 else jnp.float32
    w1c, w2c, w3c = w1.astype(cdt), w2.astype(cdt), w3.astype(cdt)
    b1c = b1.astype(jnp.float32)
    b2c = b2.astype(jnp.float32)
    b3c = b3.astype(jnp.float32)

    const = lambda i: (0, 0)  # weights/biases stay VMEM-resident across grid steps

    def build(dim_sem):
        return pl.pallas_call(
            cfe_kernel,
            out_shape=jax.ShapeDtypeStruct((n, D_OUT), jnp.float32),
            grid=grid,
            in_specs=[
                pl.BlockSpec((tile_n, D_IN), lambda i: (i, 0)),  # x tile
                pl.BlockSpec((D_IN, H1), const),                 # w1
                pl.BlockSpec((1, H1), const),                    # b1
                pl.BlockSpec((H1, H2), const),                   # w2
                pl.BlockSpec((1, H2), const),                    # b2
                pl.BlockSpec((H2, D_OUT), const),                # w3
                pl.BlockSpec((1, D_OUT), const),                 # b3
            ],
            out_specs=pl.BlockSpec((tile_n, D_OUT), lambda i: (i, 0)),
            compiler_params=pltpu.CompilerParams(dimension_semantics=dim_sem),
        )

    last_exc = None
    for sem in _dim_semantics_candidates():
        try:
            return build(sem)(x, w1c, b1c, w2c, b2c, w3c, b3c)
        except Exception as exc:  # e.g. CORE_PARALLEL unsupported -> retry 'parallel'
            last_exc = exc
    raise last_exc


def init_params(key):
    """PyTorch nn.Linear default init: U(-1/sqrt(fan_in), 1/sqrt(fan_in))."""
    ks = jax.random.split(key, 6)
    params = []
    for (fan_in, fan_out), (kw, kb) in zip(
        [(D_IN, H1), (H1, H2), (H2, D_OUT)],
        [(ks[0], ks[1]), (ks[2], ks[3]), (ks[4], ks[5])],
    ):
        bound = 1.0 / jnp.sqrt(jnp.float32(fan_in))
        w = jax.random.uniform(kw, (fan_in, fan_out), jnp.float32, -bound, bound)
        b = jax.random.uniform(kb, (1, fan_out), jnp.float32, -bound, bound)
        params.extend([w, b])
    return tuple(params)


def reference_forward(x, w1, b1, w2, b2, w3, b3):
    h = _leaky_relu(x @ w1 + b1)
    h = _leaky_relu(h @ w2 + b2)
    h = _leaky_relu(h @ w3 + b3)
    return h


if __name__ == "__main__":
    key = jax.random.PRNGKey(0)
    kx1, kx2, kp = jax.random.split(key, 3)
    w1, b1, w2, b2, w3, b3 = init_params(kp)

    # 1) Small batch, f32 compute path: tight check against the reference.
    x_small = jax.random.normal(kx1, (8, D_IN), jnp.float32)
    out_f32 = jax.block_until_ready(
        cfe_forward(x_small, w1, b1, w2, b2, w3, b3, use_bf16=False))
    ref_f32 = reference_forward(x_small, w1, b1, w2, b2, w3, b3)
    assert out_f32.shape == (8, D_OUT)
    assert jnp.allclose(out_f32, ref_f32, atol=1e-4, rtol=1e-4), \
        "f32 path mismatch vs JAX reference"

    # 2) Multi-tile batch (non-multiple of the tile -> exercises the masked tail
    #    tile and the multi-step grid), bf16 MXU path: relaxed tolerance.
    n_big = 1037
    x_big = jax.random.normal(kx2, (n_big, D_IN), jnp.float32)
    out_bf16 = jax.block_until_ready(
        cfe_forward(x_big, w1, b1, w2, b2, w3, b3, use_bf16=True))
    ref_big = reference_forward(x_big, w1, b1, w2, b2, w3, b3)
    assert out_bf16.shape == (n_big, D_OUT)
    assert jnp.allclose(out_bf16, ref_big, atol=3e-2, rtol=3e-2), \
        "bf16 path mismatch vs JAX reference (beyond relaxed tolerance)"

    print("KERNEL_OK")
</pallas_src>

<mosaic_0001>
module attributes {stable_mosaic.version = 11 : i64} {
  func.func @cfe_kernel(%arg0: i32, %arg1: memref<8x310xf32, #tpu.memory_space<vmem>>, %arg2: memref<310x256xf32, #tpu.memory_space<vmem>>, %arg3: memref<1x256xf32, #tpu.memory_space<vmem>>, %arg4: memref<256x128xf32, #tpu.memory_space<vmem>>, %arg5: memref<1x128xf32, #tpu.memory_space<vmem>>, %arg6: memref<128x64xf32, #tpu.memory_space<vmem>>, %arg7: memref<1x64xf32, #tpu.memory_space<vmem>>, %arg8: memref<8x64xf32, #tpu.memory_space<vmem>>) attributes {dimension_semantics = [#tpu.dimension_semantics<parallel>], iteration_bounds = array<i64: 1>, scalar_prefetch = 0 : i64, scratch_operands = 0 : i64, tpu.core_type = #tpu.core_type<tc>, window_params = [{transform_indices = @transform_0, window_bounds = array<i64: 8, 310>}, {pipeline_mode = #tpu.pipeline_mode<synchronous>, transform_indices = @transform_1, window_bounds = array<i64: 310, 256>}, {pipeline_mode = #tpu.pipeline_mode<synchronous>, transform_indices = @transform_2, window_bounds = array<i64: 1, 256>}, {pipeline_mode = #tpu.pipeline_mode<synchronous>, transform_indices = @transform_3, window_bounds = array<i64: 256, 128>}, {pipeline_mode = #tpu.pipeline_mode<synchronous>, transform_indices = @transform_4, window_bounds = array<i64: 1, 128>}, {pipeline_mode = #tpu.pipeline_mode<synchronous>, transform_indices = @transform_5, window_bounds = array<i64: 128, 64>}, {pipeline_mode = #tpu.pipeline_mode<synchronous>, transform_indices = @transform_6, window_bounds = array<i64: 1, 64>}, {transform_indices = @transform_7, window_bounds = array<i64: 8, 64>}]} {
    %c0 = arith.constant 0 : index
    %c0_0 = arith.constant 0 : index
    %0 = vector.load %arg1[%c0, %c0_0] : memref<8x310xf32, #tpu.memory_space<vmem>>, vector<8x310xf32>
    %c0_1 = arith.constant 0 : index
    %c0_2 = arith.constant 0 : index
    %1 = vector.load %arg2[%c0_1, %c0_2] : memref<310x256xf32, #tpu.memory_space<vmem>>, vector<310x256xf32>
    %cst = arith.constant dense<0.000000e+00> : vector<8x256xf32>
    %2 = tpu.matmul %0, %1, %cst {dimension_numbers = #tpu.dot_dimension_numbers<[1], [0], [0], [1], [0, 0, 1, 1], [], []>} : vector<8x310xf32>, vector<310x256xf32>, vector<8x256xf32> -> vector<8x256xf32>
    %c0_3 = arith.constant 0 : index
    %c0_4 = arith.constant 0 : index
    %3 = vector.load %arg3[%c0_3, %c0_4] : memref<1x256xf32, #tpu.memory_space<vmem>>, vector<1x256xf32>
    %4 = vector.broadcast %3 : vector<1x256xf32> to vector<8x256xf32>
    %5 = arith.addf %2, %4 : vector<8x256xf32>
    %cst_5 = arith.constant 0.000000e+00 : f32
    %6 = vector.broadcast %cst_5 : f32 to vector<8x256xf32>
    %7 = arith.cmpf ogt, %5, %6 : vector<8x256xf32>
    %cst_6 = arith.constant 0.00999999977 : f32
    %8 = vector.broadcast %cst_6 : f32 to vector<8x256xf32>
    %9 = arith.mulf %8, %5 : vector<8x256xf32>
    %10 = arith.select %7, %5, %9 : vector<8x256xi1>, vector<8x256xf32>
    %c0_7 = arith.constant 0 : index
    %c0_8 = arith.constant 0 : index
    %11 = vector.load %arg4[%c0_7, %c0_8] : memref<256x128xf32, #tpu.memory_space<vmem>>, vector<256x128xf32>
    %cst_9 = arith.constant dense<0.000000e+00> : vector<8x128xf32>
    %12 = tpu.matmul %10, %11, %cst_9 {dimension_numbers = #tpu.dot_dimension_numbers<[1], [0], [0], [1], [0, 0, 1, 1], [], []>} : vector<8x256xf32>, vector<256x128xf32>, vector<8x128xf32> -> vector<8x128xf32>
    %c0_10 = arith.constant 0 : index
    %c0_11 = arith.constant 0 : index
    %13 = vector.load %arg5[%c0_10, %c0_11] : memref<1x128xf32, #tpu.memory_space<vmem>>, vector<1x128xf32>
    %14 = vector.broadcast %13 : vector<1x128xf32> to vector<8x128xf32>
    %15 = arith.addf %12, %14 : vector<8x128xf32>
    %cst_12 = arith.constant 0.000000e+00 : f32
    %16 = vector.broadcast %cst_12 : f32 to vector<8x128xf32>
    %17 = arith.cmpf ogt, %15, %16 : vector<8x128xf32>
    %cst_13 = arith.constant 0.00999999977 : f32
    %18 = vector.broadcast %cst_13 : f32 to vector<8x128xf32>
    %19 = arith.mulf %18, %15 : vector<8x128xf32>
    %20 = arith.select %17, %15, %19 : vector<8x128xi1>, vector<8x128xf32>
    %c0_14 = arith.constant 0 : index
    %c0_15 = arith.constant 0 : index
    %21 = vector.load %arg6[%c0_14, %c0_15] : memref<128x64xf32, #tpu.memory_space<vmem>>, vector<128x64xf32>
    %cst_16 = arith.constant dense<0.000000e+00> : vector<8x64xf32>
    %22 = tpu.matmul %20, %21, %cst_16 {dimension_numbers = #tpu.dot_dimension_numbers<[1], [0], [0], [1], [0, 0, 1, 1], [], []>} : vector<8x128xf32>, vector<128x64xf32>, vector<8x64xf32> -> vector<8x64xf32>
    %c0_17 = arith.constant 0 : index
    %c0_18 = arith.constant 0 : index
    %23 = vector.load %arg7[%c0_17, %c0_18] : memref<1x64xf32, #tpu.memory_space<vmem>>, vector<1x64xf32>
    %24 = vector.broadcast %23 : vector<1x64xf32> to vector<8x64xf32>
    %25 = arith.addf %22, %24 : vector<8x64xf32>
    %cst_19 = arith.constant 0.000000e+00 : f32
    %26 = vector.broadcast %cst_19 : f32 to vector<8x64xf32>
    %27 = arith.cmpf ogt, %25, %26 : vector<8x64xf32>
    %cst_20 = arith.constant 0.00999999977 : f32
    %28 = vector.broadcast %cst_20 : f32 to vector<8x64xf32>
    %29 = arith.mulf %28, %25 : vector<8x64xf32>
    %30 = arith.select %27, %25, %29 : vector<8x64xi1>, vector<8x64xf32>
    %c0_21 = arith.constant 0 : index
    %c0_22 = arith.constant 0 : index
    %31 = vector.load %arg8[%c0_21, %c0_22] : memref<8x64xf32, #tpu.memory_space<vmem>>, vector<8x64xf32>
    tpu.vector_store %arg8[%c0_21, %c0_22], %30 {strides = array<i32>} : memref<8x64xf32, #tpu.memory_space<vmem>>, vector<8x64xf32>,
    return
  }
  func.func @transform_0(%arg0: i32) -> (i32, i32) {
    %c0_i32 = arith.constant 0 : i32
    %c0_i32_0 = arith.constant 0 : i32
    return %arg0, %c0_i32 : i32, i32
  }
  func.func @transform_1(%arg0: i32) -> (i32, i32) {
    %c0_i32 = arith.constant 0 : i32
    %c0_i32_0 = arith.constant 0 : i32
    %c0_i32_1 = arith.constant 0 : i32
    return %c0_i32, %c0_i32_0 : i32, i32
  }
  func.func @transform_2(%arg0: i32) -> (i32, i32) {
    %c0_i32 = arith.constant 0 : i32
    %c0_i32_0 = arith.constant 0 : i32
    %c0_i32_1 = arith.constant 0 : i32
    return %c0_i32, %c0_i32_0 : i32, i32
  }
  func.func @transform_3(%arg0: i32) -> (i32, i32) {
    %c0_i32 = arith.constant 0 : i32
    %c0_i32_0 = arith.constant 0 : i32
    %c0_i32_1 = arith.constant 0 : i32
    return %c0_i32, %c0_i32_0 : i32, i32
  }
  func.func @transform_4(%arg0: i32) -> (i32, i32) {
    %c0_i32 = arith.constant 0 : i32
    %c0_i32_0 = arith.constant 0 : i32
    %c0_i32_1 = arith.constant 0 : i32
    return %c0_i32, %c0_i32_0 : i32, i32
  }
  func.func @transform_5(%arg0: i32) -> (i32, i32) {
    %c0_i32 = arith.constant 0 : i32
    %c0_i32_0 = arith.constant 0 : i32
    %c0_i32_1 = arith.constant 0 : i32
    return %c0_i32, %c0_i32_0 : i32, i32
  }
  func.func @transform_6(%arg0: i32) -> (i32, i32) {
    %c0_i32 = arith.constant 0 : i32
    %c0_i32_0 = arith.constant 0 : i32
    %c0_i32_1 = arith.constant 0 : i32
    return %c0_i32, %c0_i32_0 : i32, i32
  }
  func.func @transform_7(%arg0: i32) -> (i32, i32) {
    %c0_i32 = arith.constant 0 : i32
    %c0_i32_0 = arith.constant 0 : i32
    return %arg0, %c0_i32 : i32, i32
  }
}

</mosaic_0001>

<llo_original>
// kernel: tpu_custom_call.1
$region0: #{tpu_custom_call.1}
  #allocation0 [shape = 'u32[]', space=smem, size = 0x4, offset = 0x4, fixed_abs, tag = 'smem constant byte address 0x4 - core index']
  #allocation1 [shape = 'u32[72,128]{1,0:T(1,128)}', space=vmem, size = 0x9000, scoped, tag = 'internal scratch']
  %s0 = inlined_call_operand.vmem [shape: f32[8,310], index: 0, kind: input, shape index: {}]
  %s1 = inlined_call_operand.hbm [shape: f32[310,256], index: 1, kind: input, shape index: {}]
  %s2 = inlined_call_operand.vmem [shape: f32[1,256], index: 2, kind: input, shape index: {}]
  %s3 = inlined_call_operand.hbm [shape: f32[256,128], index: 3, kind: input, shape index: {}]
  %s4 = inlined_call_operand.vmem [shape: f32[1,128], index: 4, kind: input, shape index: {}]
  %s5 = inlined_call_operand.vmem [shape: f32[128,64], index: 5, kind: input, shape index: {}]
  %s6 = inlined_call_operand.vmem [shape: f32[1,64], index: 6, kind: input, shape index: {}]
  %s7 = inlined_call_operand.hbm [shape: f32[8,64], index: 7, kind: output, shape index: {}]
  %s8 = sld [smem:[#allocation0]]
  $region46: #{tpu_custom_call.1} parent=0
    _
  %s10 = ssub.s32 1, %s8
  %s11 = scalar_select 0, %s10, %s8
  $region1: #{tpu_custom_call.1} parent=0
    #allocation2 [shape = 'u8[319488]{0}', space=vmem, size = 0x4e000, scoped, tag = 'input window, operand 1, single buffered']
    #allocation3 [shape = 's32[1]{0}', space=sflag, size = 0x4, scoped, tag = 'scoped memory for tpu_custom_call.1']
    #allocation4 [shape = 's32[1]{0}', space=sflag, size = 0x4, scoped, tag = 'scoped memory for tpu_custom_call.1']
    #allocation5 [shape = 'u8[131072]{0}', space=vmem, size = 0x20000, scoped, tag = 'input window, operand 3, single buffered']
    #allocation6 [shape = 's32[1]{0}', space=sflag, size = 0x4, scoped, tag = 'scoped memory for tpu_custom_call.1']
    #allocation7 [shape = 'u8[4096]{0}', space=vmem, size = 0x1000, scoped, tag = 'output window, operand 0, single buffered']
    %12 = vsyncpa [#allocation3], 0
    %13 = vsyncpa [#allocation6], 0
    %14 = vsyncpa [#allocation4], 0
    // Predicated region
    $region2: #{tpu_custom_call.1} parent=1 // pred_check
      _
    $region3: #{tpu_custom_call.1} parent=1 // pred_check_branch
      %16 = sbr.rel (0) target = $region5
    $region4: #{tpu_custom_call.1} parent=1 // pred_region
      _
    $region5: #{tpu_custom_call.1} parent=1 // pred_fallthru
      _
    // Predicated region
    $region6: #{tpu_custom_call.1} parent=1 // pred_check
      _
    $region7: #{tpu_custom_call.1} parent=1 // pred_check_branch
      %18 = sbr.rel (0) target = $region9
    $region8: #{tpu_custom_call.1} parent=1 // pred_region
      %20 = vsyncadd [#allocation3], 0
      %s21 = sshll.u32 %s1, 4
      %s22 = int_to_ptr.hbm [resolvable:$true] %s21
      %s23 = sshll.u32 [#allocation2], 4
      %s24 = int_to_ptr.vmem [resolvable:$true] %s23
      %29 = dma.hbm_to_vmem [thread:$0]  %s22, 9984, %s24, [#allocation3], 256, 256, 16
    $region9: #{tpu_custom_call.1} parent=1 // pred_fallthru
      _
    // Predicated region
    $region10: #{tpu_custom_call.1} parent=1 // pred_check
      _
    $region11: #{tpu_custom_call.1} parent=1 // pred_check_branch
      %31 = sbr.rel (0) target = $region13
    $region12: #{tpu_custom_call.1} parent=1 // pred_region
      _
    $region13: #{tpu_custom_call.1} parent=1 // pred_fallthru
      _
    // Predicated region
    $region14: #{tpu_custom_call.1} parent=1 // pred_check
      _
    $region15: #{tpu_custom_call.1} parent=1 // pred_check_branch
      %33 = sbr.rel (0) target = $region17
    $region16: #{tpu_custom_call.1} parent=1 // pred_region
      %35 = vsyncadd [#allocation6], 0
      %s36 = sshll.u32 %s3, 4
      %s37 = int_to_ptr.hbm [resolvable:$true] %s36
      %s38 = sshll.u32 [#allocation5], 4
      %s39 = int_to_ptr.vmem [resolvable:$true] %s38
      %44 = dma.hbm_to_vmem [thread:$0]  %s37, 4096, %s39, [#allocation6], 128, 128, 8
    $region17: #{tpu_custom_call.1} parent=1 // pred_fallthru
      _
    // Predicated region
    $region18: #{tpu_custom_call.1} parent=1 // pred_check
      _
    $region19: #{tpu_custom_call.1} parent=1 // pred_check_branch
      %46 = sbr.rel (0) target = $region21
    $region20: #{tpu_custom_call.1} parent=1 // pred_region
      _
    $region21: #{tpu_custom_call.1} parent=1 // pred_fallthru
      _
    // Predicated region
    $region22: #{tpu_custom_call.1} parent=1 // pred_check
      _
    $region23: #{tpu_custom_call.1} parent=1 // pred_check_branch
      %48 = sbr.rel (0) target = $region25
    $region24: #{tpu_custom_call.1} parent=1 // pred_region
      _
    $region25: #{tpu_custom_call.1} parent=1 // pred_fallthru
      _
    // Predicated region
    $region26: #{tpu_custom_call.1} parent=1 // pred_check
      _
    $region27: #{tpu_custom_call.1} parent=1 // pred_check_branch
      %50 = sbr.rel (0) target = $region29
    $region28: #{tpu_custom_call.1} parent=1 // pred_region
      _
    $region29: #{tpu_custom_call.1} parent=1 // pred_fallthru
      _
    // Predicated region
    $region30: #{tpu_custom_call.1} parent=1 // pred_check
      _
    $region31: #{tpu_custom_call.1} parent=1 // pred_check_branch
      %52 = sbr.rel (0) target = $region33
    $region32: #{tpu_custom_call.1} parent=1 // pred_region
      %54 = dma.done [#allocation3], 9984
    $region33: #{tpu_custom_call.1} parent=1 // pred_fallthru
      _
    // Predicated region
    $region34: #{tpu_custom_call.1} parent=1 // pred_check
      _
    $region35: #{tpu_custom_call.1} parent=1 // pred_check_branch
      %56 = sbr.rel (0) target = $region37
    $region36: #{tpu_custom_call.1} parent=1 // pred_region
      %58 = dma.done [#allocation6], 4096
    $region37: #{tpu_custom_call.1} parent=1 // pred_fallthru
      _
    %v59 = vld [vmem:[%s0] sm:$0xff]
    %v60 = vld [vmem:[%s0 + $0x8] sm:$0xff]
    %v61 = vld [vmem:[%s0 + $0x10] sm:$0xff]
    %v62 = vld [vmem:[#allocation2] sm:$0xff]
    %v63 = vld [vmem:[#allocation2 + $0x8] sm:$0xff]
    %v64 = vld [vmem:[#allocation2 + $0x10] sm:$0xff]
    %v65 = vld [vmem:[#allocation2 + $0x18] sm:$0xff]
    %v66 = vld [vmem:[#allocation2 + $0x20] sm:$0xff]
    %v67 = vld [vmem:[#allocation2 + $0x28] sm:$0xff]
    %v68 = vld [vmem:[#allocation2 + $0x30] sm:$0xff]
    %v69 = vld [vmem:[#allocation2 + $0x38] sm:$0xff]
    %v70 = vld [vmem:[#allocation2 + $0x40] sm:$0xff]
    %v71 = vld [vmem:[#allocation2 + $0x48] sm:$0xff]
    %v72 = vld [vmem:[#allocation2 + $0x50] sm:$0xff]
    %v73 = vld [vmem:[#allocation2 + $0x58] sm:$0xff]
    %v74 = vld [vmem:[#allocation2 + $0x60] sm:$0xff]
    %v75 = vld [vmem:[#allocation2 + $0x68] sm:$0xff]
    %v76 = vld [vmem:[#allocation2 + $0x70] sm:$0xff]
    %v77 = vld [vmem:[#allocation2 + $0x78] sm:$0xff]
    %v78 = vld [vmem:[#allocation2 + $0x80] sm:$0xff]
    %v79 = vld [vmem:[#allocation2 + $0x88] sm:$0xff]
    %v80 = vld [vmem:[#allocation2 + $0x90] sm:$0xff]
    %v81 = vld [vmem:[#allocation2 + $0x98] sm:$0xff]
    %v82 = vld [vmem:[#allocation2 + $0xa0] sm:$0xff]
    %v83 = vld [vmem:[#allocation2 + $0xa8] sm:$0xff]
    %v84 = vld [vmem:[#allocation2 + $0xb0] sm:$0xff]
    %v85 = vld [vmem:[#allocation2 + $0xb8] sm:$0xff]
    %v86 = vld [vmem:[#allocation2 + $0xc0] sm:$0xff]
    %v87 = vld [vmem:[#allocation2 + $0xc8] sm:$0xff]
    %v88 = vld [vmem:[#allocation2 + $0xd0] sm:$0xff]
    %v89 = vld [vmem:[#allocation2 + $0xd8] sm:$0xff]
    %v90 = vld [vmem:[#allocation2 + $0xe0] sm:$0xff]
    %v91 = vld [vmem:[#allocation2 + $0xe8] sm:$0xff]
    %v92 = vld [vmem:[#allocation2 + $0xf0] sm:$0xff]
    %v93 = vld [vmem:[#allocation2 + $0xf8] sm:$0xff]
    %v94 = vld [vmem:[#allocation2 + $0x100] sm:$0xff]
    %v95 = vld [vmem:[#allocation2 + $0x108] sm:$0xff]
    %v96 = vld [vmem:[#allocation2 + $0x110] sm:$0xff]
    %v97 = vld [vmem:[#allocation2 + $0x118] sm:$0xff]
    %v98 = vld [vmem:[#allocation2 + $0x120] sm:$0xff]
    %v99 = vld [vmem:[#allocation2 + $0x128] sm:$0xff]
    %v100 = vld [vmem:[#allocation2 + $0x130] sm:$0xff]
    %v101 = vld [vmem:[#allocation2 + $0x138] sm:$0xff]
    %v102 = vld [vmem:[#allocation2 + $0x140] sm:$0xff]
    %v103 = vld [vmem:[#allocation2 + $0x148] sm:$0xff]
    %v104 = vld [vmem:[#allocation2 + $0x150] sm:$0xff]
    %v105 = vld [vmem:[#allocation2 + $0x158] sm:$0xff]
    %v106 = vld [vmem:[#allocation2 + $0x160] sm:$0xff]
    %v107 = vld [vmem:[#allocation2 + $0x168] sm:$0xff]
    %v108 = vld [vmem:[#allocation2 + $0x170] sm:$0xff]
    %v109 = vld [vmem:[#allocation2 + $0x178] sm:$0xff]
    %v110 = vld [vmem:[#allocation2 + $0x180] sm:$0xff]
    %v111 = vld [vmem:[#allocation2 + $0x188] sm:$0xff]
    %v112 = vld [vmem:[#allocation2 + $0x190] sm:$0xff]
    %v113 = vld [vmem:[#allocation2 + $0x198] sm:$0xff]
    %v114 = vld [vmem:[#allocation2 + $0x1a0] sm:$0xff]
    %v115 = vld [vmem:[#allocation2 + $0x1a8] sm:$0xff]
    %v116 = vld [vmem:[#allocation2 + $0x1b0] sm:$0xff]
    %v117 = vld [vmem:[#allocation2 + $0x1b8] sm:$0xff]
    %v118 = vld [vmem:[#allocation2 + $0x1c0] sm:$0xff]
    %v119 = vld [vmem:[#allocation2 + $0x1c8] sm:$0xff]
    %v120 = vld [vmem:[#allocation2 + $0x1d0] sm:$0xff]
    %v121 = vld [vmem:[#allocation2 + $0x1d8] sm:$0xff]
    %v122 = vld [vmem:[#allocation2 + $0x1e0] sm:$0xff]
    %v123 = vld [vmem:[#allocation2 + $0x1e8] sm:$0xff]
    %v124 = vld [vmem:[#allocation2 + $0x1f0] sm:$0xff]
    %v125 = vld [vmem:[#allocation2 + $0x1f8] sm:$0xff]
    %v126 = vld [vmem:[#allocation2 + $0x200] sm:$0xff]
    %v127 = vld [vmem:[#allocation2 + $0x208] sm:$0xff]
    %v128 = vld [vmem:[#allocation2 + $0x210] sm:$0xff]
    %v129 = vld [vmem:[#allocation2 + $0x218] sm:$0xff]
    %v130 = vld [vmem:[#allocation2 + $0x220] sm:$0xff]
    %v131 = vld [vmem:[#allocation2 + $0x228] sm:$0xff]
    %v132 = vld [vmem:[#allocation2 + $0x230] sm:$0xff]
    %v133 = vld [vmem:[#allocation2 + $0x238] sm:$0xff]
    %v134 = vld [vmem:[#allocation2 + $0x240] sm:$0xff]
    %v135 = vld [vmem:[#allocation2 + $0x248] sm:$0xff]
    %v136 = vld [vmem:[#allocation2 + $0x250] sm:$0xff]
    %v137 = vld [vmem:[#allocation2 + $0x258] sm:$0xff]
    %v138 = vld [vmem:[#allocation2 + $0x260] sm:$0x3f]
    %v139 = vld [vmem:[#allocation2 + $0x268] sm:$0x3f]
    %v140 = vld [vmem:[%s2] sm:$0x3]
    %v142 = vperm.slane %v140, 0
    %v143 = vperm.slane %v140, 1
    %vm146 = vcmask 441344
    %v148 = vsel %vm146, %v61, 0
    %vm150 = vcmask 1045504
    %v152 = vsel %vm150, %v138, 0
    %v155 = vsel %vm150, %v139, 0
    %157 = vmatpush.msra.mxu0 %v92
    %158 = vmatpush.msra.mxu0 %v90
    %159 = vmatpush.msra.mxu0 %v88
    %160 = vmatpush.msra.mxu0 %v86
    %161 = vmatpush.msra.mxu0 %v84
    %162 = vmatpush.msra.mxu0 %v82
    %163 = vmatpush.msra.mxu0 %v80
    %164 = vmatpush.msra.mxu0 %v78
    %165 = vmatpush.msra.mxu0 %v76
    %166 = vmatpush.msra.mxu0 %v74
    %167 = vmatpush.msra.mxu0 %v72
    %168 = vmatpush.msra.mxu0 %v70
    %169 = vmatpush.msra.mxu0 %v68
    %170 = vmatpush.msra.mxu0 %v66
    %171 = vmatpush.msra.mxu0 %v64
    %172 = vmatpush.msra.mxu0 %v62
    %173 = vmatmul.f32.gmra.mxu0 %v59
    %v174 = vpop.f32.mrf.mxu0
    %v175 = vadd.f32 %v142, %v174
    %176 = vdwg.mxu0
    %177 = vmatpush.msra.mxu0 %v124
    %178 = vmatpush.msra.mxu0 %v122
    %179 = vmatpush.msra.mxu0 %v120
    %180 = vmatpush.msra.mxu0 %v118
    %181 = vmatpush.msra.mxu0 %v116
    %182 = vmatpush.msra.mxu0 %v114
    %183 = vmatpush.msra.mxu0 %v112
    %184 = vmatpush.msra.mxu0 %v110
    %185 = vmatpush.msra.mxu0 %v108
    %186 = vmatpush.msra.mxu0 %v106
    %187 = vmatpush.msra.mxu0 %v104
    %188 = vmatpush.msra.mxu0 %v102
    %189 = vmatpush.msra.mxu0 %v100
    %190 = vmatpush.msra.mxu0 %v98
    %191 = vmatpush.msra.mxu0 %v96
    %192 = vmatpush.msra.mxu0 %v94
    %193 = vmatmul.f32.gmra.mxu0 %v60
    %v194 = vpop.f32.mrf.mxu0
    %v195 = vadd.f32 %v175, %v194
    %196 = vdwg.mxu0
    %197 = vmatpush.msra.mxu0 0.0
    %198 = vmatpush.msra.mxu0 0.0
    %199 = vmatpush.msra.mxu0 0.0
    %200 = vmatpush.msra.mxu0 0.0
    %201 = vmatpush.msra.mxu0 0.0
    %202 = vmatpush.msra.mxu0 0.0
    %203 = vmatpush.msra.mxu0 0.0
    %204 = vmatpush.msra.mxu0 0.0
    %205 = vmatpush.msra.mxu0 0.0
    %206 = vmatpush.msra.mxu0 %v152
    %207 = vmatpush.msra.mxu0 %v136
    %208 = vmatpush.msra.mxu0 %v134
    %209 = vmatpush.msra.mxu0 %v132
    %210 = vmatpush.msra.mxu0 %v130
    %211 = vmatpush.msra.mxu0 %v128
    %212 = vmatpush.msra.mxu0 %v126
    %213 = vmatmul.f32.gmra.mxu0 %v148
    %v214 = vpop.f32.mrf.mxu0
    %v215 = vadd.f32 %v195, %v214
    %216 = vdwg.mxu0
    %217 = vmatpush.msra.mxu0 %v93
    %218 = vmatpush.msra.mxu0 %v91
    %219 = vmatpush.msra.mxu0 %v89
    %220 = vmatpush.msra.mxu0 %v87
    %221 = vmatpush.msra.mxu0 %v85
    %222 = vmatpush.msra.mxu0 %v83
    %223 = vmatpush.msra.mxu0 %v81
    %224 = vmatpush.msra.mxu0 %v79
    %225 = vmatpush.msra.mxu0 %v77
    %226 = vmatpush.msra.mxu0 %v75
    %227 = vmatpush.msra.mxu0 %v73
    %228 = vmatpush.msra.mxu0 %v71
    %229 = vmatpush.msra.mxu0 %v69
    %230 = vmatpush.msra.mxu0 %v67
    %231 = vmatpush.msra.mxu0 %v65
    %232 = vmatpush.msra.mxu0 %v63
    %233 = vmatmul.f32.gmra.mxu0 %v59
    %v234 = vpop.f32.mrf.mxu0
    %v235 = vadd.f32 %v143, %v234
    %236 = vdwg.mxu0
    %237 = vmatpush.msra.mxu0 %v125
    %238 = vmatpush.msra.mxu0 %v123
    %239 = vmatpush.msra.mxu0 %v121
    %240 = vmatpush.msra.mxu0 %v119
    %241 = vmatpush.msra.mxu0 %v117
    %242 = vmatpush.msra.mxu0 %v115
    %243 = vmatpush.msra.mxu0 %v113
    %244 = vmatpush.msra.mxu0 %v111
    %245 = vmatpush.msra.mxu0 %v109
    %246 = vmatpush.msra.mxu0 %v107
    %247 = vmatpush.msra.mxu0 %v105
    %248 = vmatpush.msra.mxu0 %v103
    %249 = vmatpush.msra.mxu0 %v101
    %250 = vmatpush.msra.mxu0 %v99
    %251 = vmatpush.msra.mxu0 %v97
    %252 = vmatpush.msra.mxu0 %v95
    %253 = vmatmul.f32.gmra.mxu0 %v60
    %v254 = vpop.f32.mrf.mxu0
    %v255 = vadd.f32 %v235, %v254
    %256 = vdwg.mxu0
    %257 = vmatpush.msra.mxu0 0.0
    %258 = vmatpush.msra.mxu0 0.0
    %259 = vmatpush.msra.mxu0 0.0
    %260 = vmatpush.msra.mxu0 0.0
    %261 = vmatpush.msra.mxu0 0.0
    %262 = vmatpush.msra.mxu0 0.0
    %263 = vmatpush.msra.mxu0 0.0
    %264 = vmatpush.msra.mxu0 0.0
    %265 = vmatpush.msra.mxu0 0.0
    %266 = vmatpush.msra.mxu0 %v155
    %267 = vmatpush.msra.mxu0 %v137
    %268 = vmatpush.msra.mxu0 %v135
    %269 = vmatpush.msra.mxu0 %v133
    %270 = vmatpush.msra.mxu0 %v131
    %271 = vmatpush.msra.mxu0 %v129
    %272 = vmatpush.msra.mxu0 %v127
    %273 = vmatmul.f32.gmra.mxu0 %v148
    %v274 = vpop.f32.mrf.mxu0
    %v275 = vadd.f32 %v255, %v274
    %276 = vdwg.mxu0
    %vm277 = vcmp.gt.f32.partialorder %v215, 0.0
    %vm278 = vcmp.gt.f32.partialorder %v275, 0.0
    %v279 = vmul.f32 %v215, 0.01
    %v280 = vmul.f32 %v275, 0.01
    %v281 = vsel %vm277, %v215, %v279
    %v282 = vsel %vm278, %v275, %v280
    %v283 = vld [vmem:[#allocation5] sm:$0xff]
    %v284 = vld [vmem:[#allocation5 + $0x8] sm:$0xff]
    %v285 = vld [vmem:[#allocation5 + $0x10] sm:$0xff]
    %v286 = vld [vmem:[#allocation5 + $0x18] sm:$0xff]
    %v287 = vld [vmem:[#allocation5 + $0x20] sm:$0xff]
    %v288 = vld [vmem:[#allocation5 + $0x28] sm:$0xff]
    %v289 = vld [vmem:[#allocation5 + $0x30] sm:$0xff]
    %v290 = vld [vmem:[#allocation5 + $0x38] sm:$0xff]
    %v291 = vld [vmem:[#allocation5 + $0x40] sm:$0xff]
    %v292 = vld [vmem:[#allocation5 + $0x48] sm:$0xff]
    %v293 = vld [vmem:[#allocation5 + $0x50] sm:$0xff]
    %v294 = vld [vmem:[#allocation5 + $0x58] sm:$0xff]
    %v295 = vld [vmem:[#allocation5 + $0x60] sm:$0xff]
    %v296 = vld [vmem:[#allocation5 + $0x68] sm:$0xff]
    %v297 = vld [vmem:[#allocation5 + $0x70] sm:$0xff]
    %v298 = vld [vmem:[#allocation5 + $0x78] sm:$0xff]
    %v299 = vld [vmem:[#allocation5 + $0x80] sm:$0xff]
    %v300 = vld [vmem:[#allocation5 + $0x88] sm:$0xff]
    %v301 = vld [vmem:[#allocation5 + $0x90] sm:$0xff]
    %v302 = vld [vmem:[#allocation5 + $0x98] sm:$0xff]
    %v303 = vld [vmem:[#allocation5 + $0xa0] sm:$0xff]
    %v304 = vld [vmem:[#allocation5 + $0xa8] sm:$0xff]
    %v305 = vld [vmem:[#allocation5 + $0xb0] sm:$0xff]
    %v306 = vld [vmem:[#allocation5 + $0xb8] sm:$0xff]
    %v307 = vld [vmem:[#allocation5 + $0xc0] sm:$0xff]
    %v308 = vld [vmem:[#allocation5 + $0xc8] sm:$0xff]
    %v309 = vld [vmem:[#allocation5 + $0xd0] sm:$0xff]
    %v310 = vld [vmem:[#allocation5 + $0xd8] sm:$0xff]
    %v311 = vld [vmem:[#allocation5 + $0xe0] sm:$0xff]
    %v312 = vld [vmem:[#allocation5 + $0xe8] sm:$0xff]
    %v313 = vld [vmem:[#allocation5 + $0xf0] sm:$0xff]
    %v314 = vld [vmem:[#allocation5 + $0xf8] sm:$0xff]
    %v315 = vld [vmem:[%s4] sm:$0x1]
    %v317 = vperm.slane %v315, 0
    %319 = vmatpush.msra.mxu0 %v298
    %320 = vmatpush.msra.mxu0 %v297
    %321 = vmatpush.msra.mxu0 %v296
    %322 = vmatpush.msra.mxu0 %v295
    %323 = vmatpush.msra.mxu0 %v294
    %324 = vmatpush.msra.mxu0 %v293
    %325 = vmatpush.msra.mxu0 %v292
    %326 = vmatpush.msra.mxu0 %v291
    %327 = vmatpush.msra.mxu0 %v290
    %328 = vmatpush.msra.mxu0 %v289
    %329 = vmatpush.msra.mxu0 %v288
    %330 = vmatpush.msra.mxu0 %v287
    %331 = vmatpush.msra.mxu0 %v286
    %332 = vmatpush.msra.mxu0 %v285
    %333 = vmatpush.msra.mxu0 %v284
    %334 = vmatpush.msra.mxu0 %v283
    %335 = vmatmul.f32.gmra.mxu0 %v281
    %v336 = vpop.f32.mrf.mxu0
    %v337 = vadd.f32 %v317, %v336
    %338 = vdwg.mxu0
    %339 = vmatpush.msra.mxu0 %v314
    %340 = vmatpush.msra.mxu0 %v313
    %341 = vmatpush.msra.mxu0 %v312
    %342 = vmatpush.msra.mxu0 %v311
    %343 = vmatpush.msra.mxu0 %v310
    %344 = vmatpush.msra.mxu0 %v309
    %345 = vmatpush.msra.mxu0 %v308
    %346 = vmatpush.msra.mxu0 %v307
    %347 = vmatpush.msra.mxu0 %v306
    %348 = vmatpush.msra.mxu0 %v305
    %349 = vmatpush.msra.mxu0 %v304
    %350 = vmatpush.msra.mxu0 %v303
    %351 = vmatpush.msra.mxu0 %v302
    %352 = vmatpush.msra.mxu0 %v301
    %353 = vmatpush.msra.mxu0 %v300
    %354 = vmatpush.msra.mxu0 %v299
    %355 = vmatmul.f32.gmra.mxu0 %v282
    %v356 = vpop.f32.mrf.mxu0
    %v357 = vadd.f32 %v337, %v356
    %358 = vdwg.mxu0
    %vm359 = vcmp.gt.f32.partialorder %v357, 0.0
    %v360 = vmul.f32 %v357, 0.01
    %v361 = vsel %vm359, %v357, %v360
    %v362 = vld [vmem:[%s5] sm:$0xff]
    %v363 = vld [vmem:[%s5 + $0x8] sm:$0xff]
    %v364 = vld [vmem:[%s5 + $0x10] sm:$0xff]
    %v365 = vld [vmem:[%s5 + $0x18] sm:$0xff]
    %v366 = vld [vmem:[%s5 + $0x20] sm:$0xff]
    %v367 = vld [vmem:[%s5 + $0x28] sm:$0xff]
    %v368 = vld [vmem:[%s5 + $0x30] sm:$0xff]
    %v369 = vld [vmem:[%s5 + $0x38] sm:$0xff]
    %v370 = vld [vmem:[%s5 + $0x40] sm:$0xff]
    %v371 = vld [vmem:[%s5 + $0x48] sm:$0xff]
    %v372 = vld [vmem:[%s5 + $0x50] sm:$0xff]
    %v373 = vld [vmem:[%s5 + $0x58] sm:$0xff]
    %v374 = vld [vmem:[%s5 + $0x60] sm:$0xff]
    %v375 = vld [vmem:[%s5 + $0x68] sm:$0xff]
    %v376 = vld [vmem:[%s5 + $0x70] sm:$0xff]
    %v377 = vld [vmem:[%s5 + $0x78] sm:$0xff]
    %v378 = vld [vmem:[%s6] sm:$0x1]
    %v380 = vperm.slane %v378, 0
    %382 = vmatpush.msra.mxu0 %v377
    %383 = vmatpush.msra.mxu0 %v376
    %384 = vmatpush.msra.mxu0 %v375
    %385 = vmatpush.msra.mxu0 %v374
    %386 = vmatpush.msra.mxu0 %v373
    %387 = vmatpush.msra.mxu0 %v372
    %388 = vmatpush.msra.mxu0 %v371
    %389 = vmatpush.msra.mxu0 %v370
    %390 = vmatpush.msra.mxu0 %v369
    %391 = vmatpush.msra.mxu0 %v368
    %392 = vmatpush.msra.mxu0 %v367
    %393 = vmatpush.msra.mxu0 %v366
    %394 = vmatpush.msra.mxu0 %v365
    %395 = vmatpush.msra.mxu0 %v364
    %396 = vmatpush.msra.mxu0 %v363
    %397 = vmatpush.msra.mxu0 %v362
    %398 = vmatmul.f32.gmra.mxu0 %v361
    %v399 = vpop.f32.mrf.mxu0
    %v400 = vadd.f32 %v380, %v399
    %401 = vdwg.mxu0
    %vm402 = vcmp.gt.f32.partialorder %v400, 0.0
    %v403 = vmul.f32 %v400, 0.01
    %v404 = vsel %vm402, %v400, %v403
    %vm405 = vcmask 523264
    %406 = vst.msk [vmem:[#allocation7] sm:$0xff] %vm405, %v404
    // Predicated region
    $region38: #{tpu_custom_call.1} parent=1 // pred_check
      _
    $region39: #{tpu_custom_call.1} parent=1 // pred_check_branch
      %408 = sbr.rel (0) target = $region41
    $region40: #{tpu_custom_call.1} parent=1 // pred_region
      %410 = vsyncadd [#allocation4], 0
      %s412 = sshll.u32 [#allocation7], 4
      %s413 = int_to_ptr.vmem [resolvable:$true] %s412
      %s414 = sshll.u32 %s7, 4
      %s415 = int_to_ptr.hbm [resolvable:$true] %s414
      %417 = dma.vmem_to_hbm [thread:$0]  %s413, 128, %s415, [#allocation4]
    $region41: #{tpu_custom_call.1} parent=1 // pred_fallthru
      _
    // Predicated region
    $region42: #{tpu_custom_call.1} parent=1 // pred_check
      _
    $region43: #{tpu_custom_call.1} parent=1 // pred_check_branch
      %419 = sbr.rel (0) target = $region45
    $region44: #{tpu_custom_call.1} parent=1 // pred_region
      %421 = dma.done [#allocation4], 128
    $region45: #{tpu_custom_call.1} parent=1 // pred_fallthru
      _
    %422 = vsyncpa [#allocation3], 1
    %423 = vsyncpa [#allocation6], 1
    %424 = vsyncpa [#allocation4], 1

</llo_original>
